<compile_context>
chip_gen: v7x
topology: tpu7x:2x2x1
jax: 0.10.0
libtpu: 0.0.40
codegen_flags: <defaults>
</compile_context>

<pallas_src>
import functools
import math

import jax
import jax.numpy as jnp
from jax.experimental import pallas as pl
from jax.experimental.pallas import tpu as pltpu

LANE = 128
VMEM_BUDGET_BYTES = 24 << 20  # conservative: fits v7x's 32 MiB scoped default


def _round_up(n, m):
    return ((n + m - 1) // m) * m


# ----------------------------------------------------------------------------
# Kernel: the whole MLP in one pallas_call, everything resident in VMEM.
# refs = (w_0, ..., w_{L-1}, o_ref); biases are already folded into the w_i.
# Intermediate activations never leave VMEM/vregs.
# ----------------------------------------------------------------------------
def _fused_mlp_kernel(x_ref, *refs):
    o_ref = refs[-1]
    w_refs = refs[:-1]
    n_layers = len(w_refs)
    h = x_ref[...]
    for i in range(n_layers):
        h = jnp.dot(h, w_refs[i][...], preferred_element_type=jnp.float32)
        if i < n_layers - 1:  # hidden layers get ReLU; final layer is linear
            h = jnp.maximum(h, 0.0)
    o_ref[...] = h.astype(o_ref.dtype)


# ----------------------------------------------------------------------------
# One-time parameter preparation (hoisted out of the per-call path).
# ----------------------------------------------------------------------------
def fold_params(params, hin):
    """Fold biases into lane-padded, augmented weight matrices.

    The (augmented) input activation carries a constant 1 at column `hin` and
    is zero-padded to round_up(hin+1, 128) columns.  For layer i with real
    weight W (k, n) and bias b (n,):
      * W_aug[:k, :n]        = W
      * W_aug[const_in, :n]  = b          (const_in = constant column of input)
      * W_aug[const_in, n]   = 1.0        (hidden layers only: propagate the 1)
      * everything else 0, output width padded to a multiple of 128.
    Padded columns stay exactly 0 through matmul+ReLU, and the constant column
    survives ReLU (relu(1)=1), so real columns are unaffected.
    """
    n_layers = len(params)
    in_real = hin
    in_const = hin
    in_aug = _round_up(hin + 1, LANE)
    aug_weights = []
    for i, (w, b) in enumerate(params):
        k, n = w.shape
        assert k == in_real, (k, in_real)
        is_last = i == n_layers - 1
        out_aug = _round_up(n, LANE) if is_last else _round_up(n + 1, LANE)
        w_aug = jnp.zeros((in_aug, out_aug), w.dtype)
        w_aug = w_aug.at[:k, :n].set(w)
        w_aug = w_aug.at[in_const, :n].set(b)
        if not is_last:
            w_aug = w_aug.at[in_const, n].set(1.0)  # propagate the constant 1
        aug_weights.append(w_aug)
        in_real, in_const, in_aug = n, n, out_aug
    return tuple(aug_weights)


# ----------------------------------------------------------------------------
# pallas_call wrapper (traced under jit; all shapes static at trace time).
# ----------------------------------------------------------------------------
def fused_mlp(x_aug, aug_weights):
    M = x_aug.shape[0]
    n_out = aug_weights[-1].shape[1]
    itemsize = jnp.dtype(x_aug.dtype).itemsize

    # VMEM residency check (weights + input + output, no grid, no pipelining).
    footprint = itemsize * (x_aug.size + sum(w.size for w in aug_weights) + M * n_out)
    assert footprint < VMEM_BUDGET_BYTES, (
        f"MLP footprint {footprint} B exceeds the fully-resident VMEM budget; "
        "switch to a tiled grid (over M and/or layers) before scaling up."
    )

    flops = 2 * M * sum(w.shape[0] * w.shape[1] for w in aug_weights)
    bytes_accessed = footprint
    cost = pl.CostEstimate(flops=flops, transcendentals=0, bytes_accessed=bytes_accessed)

    vmem_spec = pl.BlockSpec(memory_space=pltpu.MemorySpace.VMEM)
    return pl.pallas_call(
        _fused_mlp_kernel,
        out_shape=jax.ShapeDtypeStruct((M, n_out), x_aug.dtype),
        in_specs=[vmem_spec] * (1 + len(aug_weights)),
        out_specs=vmem_spec,
        cost_estimate=cost,
    )(x_aug, *aug_weights)


@functools.partial(jax.jit, static_argnames=("hin", "hout"))
def net_forward(x, aug_weights, hin, hout):
    """Forward pass equivalent to Net.forward: flatten, hidden ReLU layers, final linear."""
    x2d = x.reshape(-1, hin)  # x.view(-1, self.hin)
    M = x2d.shape[0]
    k_aug0 = aug_weights[0].shape[0]
    # Augment once: [x | 1 | 0-pad] up to the lane-padded width (fused by XLA).
    x_aug = (
        jnp.zeros((M, k_aug0), x2d.dtype)
        .at[:, :hin].set(x2d)
        .at[:, hin].set(1.0)
    )
    out_padded = fused_mlp(x_aug, aug_weights)
    return out_padded[:, :hout]


# ----------------------------------------------------------------------------
# Parameter init mimicking nn.Linear's U(-1/sqrt(fan_in), 1/sqrt(fan_in)).
# Weights stored as (in_features, out_features); y = x @ W + b == torch x@Wt.T+b.
# ----------------------------------------------------------------------------
def init_mlp_params(key, layer_sizes):
    params = []
    for i in range(len(layer_sizes) - 1):
        fan_in, fan_out = layer_sizes[i], layer_sizes[i + 1]
        key, kw, kb = jax.random.split(key, 3)
        bound = 1.0 / math.sqrt(fan_in)
        w = jax.random.uniform(kw, (fan_in, fan_out), jnp.float32, minval=-bound, maxval=bound)
        b = jax.random.uniform(kb, (fan_out,), jnp.float32, minval=-bound, maxval=bound)
        params.append((w, b))
    return params


if __name__ == "__main__":
    # Small shapes consistent with the module:
    # layer_n = 2 hidden layers, neuron_info = [128, 64], hin = 16*16, hout = 10
    batch = 8
    C, H, W = 1, 16, 16
    hin = C * H * W          # 256
    hout = 10
    layer_n = 2
    neuron_info = [128, 64]
    layer_sizes = [hin] + neuron_info + [hout]

    key = jax.random.PRNGKey(0)
    key, kx = jax.random.split(key)
    # NCHW input, as PyTorch would supply
    x = jax.random.normal(kx, (batch, C, H, W), dtype=jnp.float32)

    params = init_mlp_params(key, layer_sizes)

    # One-time prep: fold biases + lane-pad, keep the padded device arrays.
    aug_weights = jax.tree_util.tree_map(jax.block_until_ready, fold_params(params, hin))

    out = net_forward(x, aug_weights, hin, hout)
    out = jax.block_until_ready(out)
    assert out.shape == (batch, hout), out.shape

    # Cross-check against a pure-JAX reference of the original module math.
    ref = x.reshape(-1, hin)
    for i, (w, b) in enumerate(params):
        ref = ref @ w + b
        if i < len(params) - 1:
            ref = jnp.maximum(ref, 0.0)
    assert jnp.allclose(out, ref, atol=1e-5, rtol=1e-5)

    # TODO(synk): the PyTorch module's run() (SGD training loop, CrossEntropyLoss,
    # accuracy eval) is host-side training orchestration, not a kernel; only the
    # forward pass is implemented here.

    print("KERNEL_OK")
</pallas_src>

<mosaic_0001>
module attributes {stable_mosaic.version = 11 : i64} {
  func.func @_fused_mlp_kernel(%arg0: memref<8x384xf32, #tpu.memory_space<vmem>>, %arg1: memref<384x256xf32, #tpu.memory_space<vmem>>, %arg2: memref<256x128xf32, #tpu.memory_space<vmem>>, %arg3: memref<128x128xf32, #tpu.memory_space<vmem>>, %arg4: memref<8x128xf32, #tpu.memory_space<vmem>>) attributes {dimension_semantics = [], scalar_prefetch = 0 : i64, scratch_operands = 0 : i64, tpu.core_type = #tpu.core_type<tc>} {
    %c0 = arith.constant 0 : index
    %c0_0 = arith.constant 0 : index
    %0 = vector.load %arg0[%c0, %c0_0] : memref<8x384xf32, #tpu.memory_space<vmem>>, vector<8x384xf32>
    %c0_1 = arith.constant 0 : index
    %c0_2 = arith.constant 0 : index
    %1 = vector.load %arg1[%c0_1, %c0_2] : memref<384x256xf32, #tpu.memory_space<vmem>>, vector<384x256xf32>
    %cst = arith.constant dense<0.000000e+00> : vector<8x256xf32>
    %2 = tpu.matmul %0, %1, %cst {dimension_numbers = #tpu.dot_dimension_numbers<[1], [0], [0], [1], [0, 0, 1, 1], [], []>} : vector<8x384xf32>, vector<384x256xf32>, vector<8x256xf32> -> vector<8x256xf32>
    %cst_3 = arith.constant 0.000000e+00 : f32
    %3 = vector.broadcast %cst_3 : f32 to vector<8x256xf32>
    %4 = arith.maximumf %2, %3 : vector<8x256xf32>
    %c0_4 = arith.constant 0 : index
    %c0_5 = arith.constant 0 : index
    %5 = vector.load %arg2[%c0_4, %c0_5] : memref<256x128xf32, #tpu.memory_space<vmem>>, vector<256x128xf32>
    %cst_6 = arith.constant dense<0.000000e+00> : vector<8x128xf32>
    %6 = tpu.matmul %4, %5, %cst_6 {dimension_numbers = #tpu.dot_dimension_numbers<[1], [0], [0], [1], [0, 0, 1, 1], [], []>} : vector<8x256xf32>, vector<256x128xf32>, vector<8x128xf32> -> vector<8x128xf32>
    %cst_7 = arith.constant 0.000000e+00 : f32
    %7 = vector.broadcast %cst_7 : f32 to vector<8x128xf32>
    %8 = arith.maximumf %6, %7 : vector<8x128xf32>
    %c0_8 = arith.constant 0 : index
    %c0_9 = arith.constant 0 : index
    %9 = vector.load %arg3[%c0_8, %c0_9] : memref<128x128xf32, #tpu.memory_space<vmem>>, vector<128x128xf32>
    %cst_10 = arith.constant dense<0.000000e+00> : vector<8x128xf32>
    %10 = tpu.matmul %8, %9, %cst_10 {dimension_numbers = #tpu.dot_dimension_numbers<[1], [0], [0], [1], [0, 0, 1, 1], [], []>} : vector<8x128xf32>, vector<128x128xf32>, vector<8x128xf32> -> vector<8x128xf32>
    %c0_11 = arith.constant 0 : index
    %c0_12 = arith.constant 0 : index
    %11 = vector.load %arg4[%c0_11, %c0_12] : memref<8x128xf32, #tpu.memory_space<vmem>>, vector<8x128xf32>
    tpu.vector_store %arg4[%c0_11, %c0_12], %10 {strides = array<i32>} : memref<8x128xf32, #tpu.memory_space<vmem>>, vector<8x128xf32>,
    return
  }
}

</mosaic_0001>

<llo_original>
// kernel: net_forward.1
$region0: #{net_forward.1}
  #allocation0 [shape = 'u32[]', space=smem, size = 0x4, offset = 0x4, fixed_abs, tag = 'smem constant byte address 0x4 - core index']
  #allocation1 [shape = 'u32[144,128]{1,0:T(1,128)}', space=vmem, size = 0x12000, scoped, tag = 'internal scratch']
  %s0 = inlined_call_operand.vmem [shape: f32[8,384], index: 0, kind: input, shape index: {}]
  %s1 = inlined_call_operand.hbm [shape: f32[384,256], index: 1, kind: input, shape index: {}]
  %s2 = inlined_call_operand.vmem [shape: f32[256,128], index: 2, kind: input, shape index: {}]
  %s3 = inlined_call_operand.vmem [shape: f32[128,128], index: 3, kind: input, shape index: {}]
  %s4 = inlined_call_operand.hbm [shape: f32[8,128], index: 4, kind: output, shape index: {}]
  %s5 = sld [smem:[#allocation0]]
  $region30: #{net_forward.1} parent=0
    _
  %s7 = ssub.s32 1, %s5
  %s8 = scalar_select 0, %s7, %s5
  $region1: #{net_forward.1} parent=0
    #allocation2 [shape = 'u8[393216]{0}', space=vmem, size = 0x60000, scoped, tag = 'input window, operand 1, single buffered']
    #allocation3 [shape = 's32[1]{0}', space=sflag, size = 0x4, scoped, tag = 'scoped memory for net_forward.1']
    #allocation4 [shape = 's32[1]{0}', space=sflag, size = 0x4, scoped, tag = 'scoped memory for net_forward.1']
    #allocation5 [shape = 'u8[4096]{0}', space=vmem, size = 0x1000, scoped, tag = 'output window, operand 0, single buffered']
    %9 = vsyncpa [#allocation3], 0
    %10 = vsyncpa [#allocation4], 0
    // Predicated region
    $region2: #{net_forward.1} parent=1 // pred_check
      _
    $region3: #{net_forward.1} parent=1 // pred_check_branch
      %12 = sbr.rel (0) target = $region5
    $region4: #{net_forward.1} parent=1 // pred_region
      _
    $region5: #{net_forward.1} parent=1 // pred_fallthru
      _
    // Predicated region
    $region6: #{net_forward.1} parent=1 // pred_check
      _
    $region7: #{net_forward.1} parent=1 // pred_check_branch
      %14 = sbr.rel (0) target = $region9
    $region8: #{net_forward.1} parent=1 // pred_region
      %s16 = ssub.s32 12288, 12288
      %17 = vsyncadd [#allocation3], %s16
      %s18 = sshll.u32 [#allocation2], 4
      %s19 = int_to_ptr.vmem [resolvable:$true] %s18
      %24 = dma.hbm_to_vmem [thread:$0]  %s1, 12288, %s19, [#allocation3], 256, 256, 16
    $region9: #{net_forward.1} parent=1 // pred_fallthru
      _
    // Predicated region
    $region10: #{net_forward.1} parent=1 // pred_check
      _
    $region11: #{net_forward.1} parent=1 // pred_check_branch
      %26 = sbr.rel (0) target = $region13
    $region12: #{net_forward.1} parent=1 // pred_region
      _
    $region13: #{net_forward.1} parent=1 // pred_fallthru
      _
    // Predicated region
    $region14: #{net_forward.1} parent=1 // pred_check
      _
    $region15: #{net_forward.1} parent=1 // pred_check_branch
      %28 = sbr.rel (0) target = $region17
    $region16: #{net_forward.1} parent=1 // pred_region
      _
    $region17: #{net_forward.1} parent=1 // pred_fallthru
      _
    // Predicated region
    $region18: #{net_forward.1} parent=1 // pred_check
      _
    $region19: #{net_forward.1} parent=1 // pred_check_branch
      %30 = sbr.rel (0) target = $region21
    $region20: #{net_forward.1} parent=1 // pred_region
      %31 = dma.done [#allocation3], 12288
    $region21: #{net_forward.1} parent=1 // pred_fallthru
      _
    %v32 = vld [vmem:[%s0] sm:$0xff]
    %v33 = vld [vmem:[%s0 + $0x8] sm:$0xff]
    %v34 = vld [vmem:[%s0 + $0x10] sm:$0xff]
    %v35 = vld [vmem:[#allocation2] sm:$0xff]
    %v36 = vld [vmem:[#allocation2 + $0x8] sm:$0xff]
    %v37 = vld [vmem:[#allocation2 + $0x10] sm:$0xff]
    %v38 = vld [vmem:[#allocation2 + $0x18] sm:$0xff]
    %v39 = vld [vmem:[#allocation2 + $0x20] sm:$0xff]
    %v40 = vld [vmem:[#allocation2 + $0x28] sm:$0xff]
    %v41 = vld [vmem:[#allocation2 + $0x30] sm:$0xff]
    %v42 = vld [vmem:[#allocation2 + $0x38] sm:$0xff]
    %v43 = vld [vmem:[#allocation2 + $0x40] sm:$0xff]
    %v44 = vld [vmem:[#allocation2 + $0x48] sm:$0xff]
    %v45 = vld [vmem:[#allocation2 + $0x50] sm:$0xff]
    %v46 = vld [vmem:[#allocation2 + $0x58] sm:$0xff]
    %v47 = vld [vmem:[#allocation2 + $0x60] sm:$0xff]
    %v48 = vld [vmem:[#allocation2 + $0x68] sm:$0xff]
    %v49 = vld [vmem:[#allocation2 + $0x70] sm:$0xff]
    %v50 = vld [vmem:[#allocation2 + $0x78] sm:$0xff]
    %v51 = vld [vmem:[#allocation2 + $0x80] sm:$0xff]
    %v52 = vld [vmem:[#allocation2 + $0x88] sm:$0xff]
    %v53 = vld [vmem:[#allocation2 + $0x90] sm:$0xff]
    %v54 = vld [vmem:[#allocation2 + $0x98] sm:$0xff]
    %v55 = vld [vmem:[#allocation2 + $0xa0] sm:$0xff]
    %v56 = vld [vmem:[#allocation2 + $0xa8] sm:$0xff]
    %v57 = vld [vmem:[#allocation2 + $0xb0] sm:$0xff]
    %v58 = vld [vmem:[#allocation2 + $0xb8] sm:$0xff]
    %v59 = vld [vmem:[#allocation2 + $0xc0] sm:$0xff]
    %v60 = vld [vmem:[#allocation2 + $0xc8] sm:$0xff]
    %v61 = vld [vmem:[#allocation2 + $0xd0] sm:$0xff]
    %v62 = vld [vmem:[#allocation2 + $0xd8] sm:$0xff]
    %v63 = vld [vmem:[#allocation2 + $0xe0] sm:$0xff]
    %v64 = vld [vmem:[#allocation2 + $0xe8] sm:$0xff]
    %v65 = vld [vmem:[#allocation2 + $0xf0] sm:$0xff]
    %v66 = vld [vmem:[#allocation2 + $0xf8] sm:$0xff]
    %v67 = vld [vmem:[#allocation2 + $0x100] sm:$0xff]
    %v68 = vld [vmem:[#allocation2 + $0x108] sm:$0xff]
    %v69 = vld [vmem:[#allocation2 + $0x110] sm:$0xff]
    %v70 = vld [vmem:[#allocation2 + $0x118] sm:$0xff]
    %v71 = vld [vmem:[#allocation2 + $0x120] sm:$0xff]
    %v72 = vld [vmem:[#allocation2 + $0x128] sm:$0xff]
    %v73 = vld [vmem:[#allocation2 + $0x130] sm:$0xff]
    %v74 = vld [vmem:[#allocation2 + $0x138] sm:$0xff]
    %v75 = vld [vmem:[#allocation2 + $0x140] sm:$0xff]
    %v76 = vld [vmem:[#allocation2 + $0x148] sm:$0xff]
    %v77 = vld [vmem:[#allocation2 + $0x150] sm:$0xff]
    %v78 = vld [vmem:[#allocation2 + $0x158] sm:$0xff]
    %v79 = vld [vmem:[#allocation2 + $0x160] sm:$0xff]
    %v80 = vld [vmem:[#allocation2 + $0x168] sm:$0xff]
    %v81 = vld [vmem:[#allocation2 + $0x170] sm:$0xff]
    %v82 = vld [vmem:[#allocation2 + $0x178] sm:$0xff]
    %v83 = vld [vmem:[#allocation2 + $0x180] sm:$0xff]
    %v84 = vld [vmem:[#allocation2 + $0x188] sm:$0xff]
    %v85 = vld [vmem:[#allocation2 + $0x190] sm:$0xff]
    %v86 = vld [vmem:[#allocation2 + $0x198] sm:$0xff]
    %v87 = vld [vmem:[#allocation2 + $0x1a0] sm:$0xff]
    %v88 = vld [vmem:[#allocation2 + $0x1a8] sm:$0xff]
    %v89 = vld [vmem:[#allocation2 + $0x1b0] sm:$0xff]
    %v90 = vld [vmem:[#allocation2 + $0x1b8] sm:$0xff]
    %v91 = vld [vmem:[#allocation2 + $0x1c0] sm:$0xff]
    %v92 = vld [vmem:[#allocation2 + $0x1c8] sm:$0xff]
    %v93 = vld [vmem:[#allocation2 + $0x1d0] sm:$0xff]
    %v94 = vld [vmem:[#allocation2 + $0x1d8] sm:$0xff]
    %v95 = vld [vmem:[#allocation2 + $0x1e0] sm:$0xff]
    %v96 = vld [vmem:[#allocation2 + $0x1e8] sm:$0xff]
    %v97 = vld [vmem:[#allocation2 + $0x1f0] sm:$0xff]
    %v98 = vld [vmem:[#allocation2 + $0x1f8] sm:$0xff]
    %v99 = vld [vmem:[#allocation2 + $0x200] sm:$0xff]
    %v100 = vld [vmem:[#allocation2 + $0x208] sm:$0xff]
    %v101 = vld [vmem:[#allocation2 + $0x210] sm:$0xff]
    %v102 = vld [vmem:[#allocation2 + $0x218] sm:$0xff]
    %v103 = vld [vmem:[#allocation2 + $0x220] sm:$0xff]
    %v104 = vld [vmem:[#allocation2 + $0x228] sm:$0xff]
    %v105 = vld [vmem:[#allocation2 + $0x230] sm:$0xff]
    %v106 = vld [vmem:[#allocation2 + $0x238] sm:$0xff]
    %v107 = vld [vmem:[#allocation2 + $0x240] sm:$0xff]
    %v108 = vld [vmem:[#allocation2 + $0x248] sm:$0xff]
    %v109 = vld [vmem:[#allocation2 + $0x250] sm:$0xff]
    %v110 = vld [vmem:[#allocation2 + $0x258] sm:$0xff]
    %v111 = vld [vmem:[#allocation2 + $0x260] sm:$0xff]
    %v112 = vld [vmem:[#allocation2 + $0x268] sm:$0xff]
    %v113 = vld [vmem:[#allocation2 + $0x270] sm:$0xff]
    %v114 = vld [vmem:[#allocation2 + $0x278] sm:$0xff]
    %v115 = vld [vmem:[#allocation2 + $0x280] sm:$0xff]
    %v116 = vld [vmem:[#allocation2 + $0x288] sm:$0xff]
    %v117 = vld [vmem:[#allocation2 + $0x290] sm:$0xff]
    %v118 = vld [vmem:[#allocation2 + $0x298] sm:$0xff]
    %v119 = vld [vmem:[#allocation2 + $0x2a0] sm:$0xff]
    %v120 = vld [vmem:[#allocation2 + $0x2a8] sm:$0xff]
    %v121 = vld [vmem:[#allocation2 + $0x2b0] sm:$0xff]
    %v122 = vld [vmem:[#allocation2 + $0x2b8] sm:$0xff]
    %v123 = vld [vmem:[#allocation2 + $0x2c0] sm:$0xff]
    %v124 = vld [vmem:[#allocation2 + $0x2c8] sm:$0xff]
    %v125 = vld [vmem:[#allocation2 + $0x2d0] sm:$0xff]
    %v126 = vld [vmem:[#allocation2 + $0x2d8] sm:$0xff]
    %v127 = vld [vmem:[#allocation2 + $0x2e0] sm:$0xff]
    %v128 = vld [vmem:[#allocation2 + $0x2e8] sm:$0xff]
    %v129 = vld [vmem:[#allocation2 + $0x2f0] sm:$0xff]
    %v130 = vld [vmem:[#allocation2 + $0x2f8] sm:$0xff]
    %131 = vmatprep.subr.mxu0 %v36
    %132 = vmatpush1.msra.mxu0 %v35
    %133 = vmatprep.subr.mxu0 %v38
    %134 = vmatpush1.msra.mxu0 %v37
    %135 = vmatprep.subr.mxu0 %v40
    %136 = vmatpush1.msra.mxu0 %v39
    %137 = vmatprep.subr.mxu0 %v42
    %138 = vmatpush1.msra.mxu0 %v41
    %139 = vmatprep.subr.mxu0 %v44
    %140 = vmatpush1.msra.mxu0 %v43
    %141 = vmatprep.subr.mxu0 %v46
    %142 = vmatpush1.msra.mxu0 %v45
    %143 = vmatprep.subr.mxu0 %v48
    %144 = vmatpush1.msra.mxu0 %v47
    %145 = vmatprep.subr.mxu0 %v50
    %146 = vmatpush1.msra.mxu0 %v49
    %147 = vmatprep.subr.mxu0 %v52
    %148 = vmatpush1.msra.mxu0 %v51
    %149 = vmatprep.subr.mxu0 %v54
    %150 = vmatpush1.msra.mxu0 %v53
    %151 = vmatprep.subr.mxu0 %v56
    %152 = vmatpush1.msra.mxu0 %v55
    %153 = vmatprep.subr.mxu0 %v58
    %154 = vmatpush1.msra.mxu0 %v57
    %155 = vmatprep.subr.mxu0 %v60
    %156 = vmatpush1.msra.mxu0 %v59
    %157 = vmatprep.subr.mxu0 %v62
    %158 = vmatpush1.msra.mxu0 %v61
    %159 = vmatprep.subr.mxu0 %v64
    %160 = vmatpush1.msra.mxu0 %v63
    %161 = vmatprep.subr.mxu0 %v66
    %162 = vmatpush1.msra.mxu0 %v65
    %163 = vmatprep.subr.mxu0 %v68
    %164 = vmatpush1.msra.mxu0 %v67
    %165 = vmatprep.subr.mxu0 %v70
    %166 = vmatpush1.msra.mxu0 %v69
    %167 = vmatprep.subr.mxu0 %v72
    %168 = vmatpush1.msra.mxu0 %v71
    %169 = vmatprep.subr.mxu0 %v74
    %170 = vmatpush1.msra.mxu0 %v73
    %171 = vmatprep.subr.mxu0 %v76
    %172 = vmatpush1.msra.mxu0 %v75
    %173 = vmatprep.subr.mxu0 %v78
    %174 = vmatpush1.msra.mxu0 %v77
    %175 = vmatprep.subr.mxu0 %v80
    %176 = vmatpush1.msra.mxu0 %v79
    %177 = vmatprep.subr.mxu0 %v82
    %178 = vmatpush1.msra.mxu0 %v81
    %179 = vmatprep.subr.mxu0 %v84
    %180 = vmatpush1.msra.mxu0 %v83
    %181 = vmatprep.subr.mxu0 %v86
    %182 = vmatpush1.msra.mxu0 %v85
    %183 = vmatprep.subr.mxu0 %v88
    %184 = vmatpush1.msra.mxu0 %v87
    %185 = vmatprep.subr.mxu0 %v90
    %186 = vmatpush1.msra.mxu0 %v89
    %187 = vmatprep.subr.mxu0 %v92
    %188 = vmatpush1.msra.mxu0 %v91
    %189 = vmatprep.subr.mxu0 %v94
    %190 = vmatpush1.msra.mxu0 %v93
    %191 = vmatprep.subr.mxu0 %v96
    %192 = vmatpush1.msra.mxu0 %v95
    %193 = vmatprep.subr.mxu0 %v98
    %194 = vmatpush1.msra.mxu0 %v97
    %195 = vmatprep.mubr.f32.mxu0 %v33
    %196 = vmatmul.mubr.f32.gmra.mrb[0].mxu0 %v32
    %v197 = vpop.f32.mrb[0].mxu0
    %v198 = vadd.f32 0.0, %v197
    %v199 = vpop.f32.mrb[0].mxu0
    %v200 = vadd.f32 0.0, %v199
    %201 = vdwg.mxu0
    %202 = vmatprep.subr.mxu0 %v100
    %203 = vmatpush1.msra.mxu0 %v99
    %204 = vmatprep.subr.mxu0 %v102
    %205 = vmatpush1.msra.mxu0 %v101
    %206 = vmatprep.subr.mxu0 %v104
    %207 = vmatpush1.msra.mxu0 %v103
    %208 = vmatprep.subr.mxu0 %v106
    %209 = vmatpush1.msra.mxu0 %v105
    %210 = vmatprep.subr.mxu0 %v108
    %211 = vmatpush1.msra.mxu0 %v107
    %212 = vmatprep.subr.mxu0 %v110
    %213 = vmatpush1.msra.mxu0 %v109
    %214 = vmatprep.subr.mxu0 %v112
    %215 = vmatpush1.msra.mxu0 %v111
    %216 = vmatprep.subr.mxu0 %v114
    %217 = vmatpush1.msra.mxu0 %v113
    %218 = vmatprep.subr.mxu0 %v116
    %219 = vmatpush1.msra.mxu0 %v115
    %220 = vmatprep.subr.mxu0 %v118
    %221 = vmatpush1.msra.mxu0 %v117
    %222 = vmatprep.subr.mxu0 %v120
    %223 = vmatpush1.msra.mxu0 %v119
    %224 = vmatprep.subr.mxu0 %v122
    %225 = vmatpush1.msra.mxu0 %v121
    %226 = vmatprep.subr.mxu0 %v124
    %227 = vmatpush1.msra.mxu0 %v123
    %228 = vmatprep.subr.mxu0 %v126
    %229 = vmatpush1.msra.mxu0 %v125
    %230 = vmatprep.subr.mxu0 %v128
    %231 = vmatpush1.msra.mxu0 %v127
    %232 = vmatprep.subr.mxu0 %v130
    %233 = vmatpush1.msra.mxu0 %v129
    %234 = vmatprep.subr.mxu0 0.0
    %235 = vmatpush1.msra.mxu0 0.0
    %236 = vmatprep.subr.mxu0 0.0
    %237 = vmatpush1.msra.mxu0 0.0
    %238 = vmatprep.subr.mxu0 0.0
    %239 = vmatpush1.msra.mxu0 0.0
    %240 = vmatprep.subr.mxu0 0.0
    %241 = vmatpush1.msra.mxu0 0.0
    %242 = vmatprep.subr.mxu0 0.0
    %243 = vmatpush1.msra.mxu0 0.0
    %244 = vmatprep.subr.mxu0 0.0
    %245 = vmatpush1.msra.mxu0 0.0
    %246 = vmatprep.subr.mxu0 0.0
    %247 = vmatpush1.msra.mxu0 0.0
    %248 = vmatprep.subr.mxu0 0.0
    %249 = vmatpush1.msra.mxu0 0.0
    %250 = vmatprep.subr.mxu0 0.0
    %251 = vmatpush1.msra.mxu0 0.0
    %252 = vmatprep.subr.mxu0 0.0
    %253 = vmatpush1.msra.mxu0 0.0
    %254 = vmatprep.subr.mxu0 0.0
    %255 = vmatpush1.msra.mxu0 0.0
    %256 = vmatprep.subr.mxu0 0.0
    %257 = vmatpush1.msra.mxu0 0.0
    %258 = vmatprep.subr.mxu0 0.0
    %259 = vmatpush1.msra.mxu0 0.0
    %260 = vmatprep.subr.mxu0 0.0
    %261 = vmatpush1.msra.mxu0 0.0
    %262 = vmatprep.subr.mxu0 0.0
    %263 = vmatpush1.msra.mxu0 0.0
    %264 = vmatprep.subr.mxu0 0.0
    %265 = vmatpush1.msra.mxu0 0.0
    %266 = vmatprep.mubr.f32.mxu0 0.0
    %267 = vmatmul.mubr.f32.gmra.mrb[0].mxu0 %v34
    %v268 = vpop.f32.mrb[0].mxu0
    %v269 = vadd.f32 %v198, %v268
    %v270 = vpop.f32.mrb[0].mxu0
    %v271 = vadd.f32 %v200, %v270
    %272 = vdwg.mxu0
    %v273 = vmax.f32 %v269, 0.0
    %v274 = vmax.f32 %v271, 0.0
    %v275 = vld [vmem:[%s2] sm:$0xff]
    %v276 = vld [vmem:[%s2 + $0x8] sm:$0xff]
    %v277 = vld [vmem:[%s2 + $0x10] sm:$0xff]
    %v278 = vld [vmem:[%s2 + $0x18] sm:$0xff]
    %v279 = vld [vmem:[%s2 + $0x20] sm:$0xff]
    %v280 = vld [vmem:[%s2 + $0x28] sm:$0xff]
    %v281 = vld [vmem:[%s2 + $0x30] sm:$0xff]
    %v282 = vld [vmem:[%s2 + $0x38] sm:$0xff]
    %v283 = vld [vmem:[%s2 + $0x40] sm:$0xff]
    %v284 = vld [vmem:[%s2 + $0x48] sm:$0xff]
    %v285 = vld [vmem:[%s2 + $0x50] sm:$0xff]
    %v286 = vld [vmem:[%s2 + $0x58] sm:$0xff]
    %v287 = vld [vmem:[%s2 + $0x60] sm:$0xff]
    %v288 = vld [vmem:[%s2 + $0x68] sm:$0xff]
    %v289 = vld [vmem:[%s2 + $0x70] sm:$0xff]
    %v290 = vld [vmem:[%s2 + $0x78] sm:$0xff]
    %v291 = vld [vmem:[%s2 + $0x80] sm:$0xff]
    %v292 = vld [vmem:[%s2 + $0x88] sm:$0xff]
    %v293 = vld [vmem:[%s2 + $0x90] sm:$0xff]
    %v294 = vld [vmem:[%s2 + $0x98] sm:$0xff]
    %v295 = vld [vmem:[%s2 + $0xa0] sm:$0xff]
    %v296 = vld [vmem:[%s2 + $0xa8] sm:$0xff]
    %v297 = vld [vmem:[%s2 + $0xb0] sm:$0xff]
    %v298 = vld [vmem:[%s2 + $0xb8] sm:$0xff]
    %v299 = vld [vmem:[%s2 + $0xc0] sm:$0xff]
    %v300 = vld [vmem:[%s2 + $0xc8] sm:$0xff]
    %v301 = vld [vmem:[%s2 + $0xd0] sm:$0xff]
    %v302 = vld [vmem:[%s2 + $0xd8] sm:$0xff]
    %v303 = vld [vmem:[%s2 + $0xe0] sm:$0xff]
    %v304 = vld [vmem:[%s2 + $0xe8] sm:$0xff]
    %v305 = vld [vmem:[%s2 + $0xf0] sm:$0xff]
    %v306 = vld [vmem:[%s2 + $0xf8] sm:$0xff]
    %307 = vmatprep.subr.mxu0 0.0
    %308 = vmatpush1.msra.mxu0 %v275
    %309 = vmatprep.subr.mxu0 0.0
    %310 = vmatpush1.msra.mxu0 %v276
    %311 = vmatprep.subr.mxu0 0.0
    %312 = vmatpush1.msra.mxu0 %v277
    %313 = vmatprep.subr.mxu0 0.0
    %314 = vmatpush1.msra.mxu0 %v278
    %315 = vmatprep.subr.mxu0 0.0
    %316 = vmatpush1.msra.mxu0 %v279
    %317 = vmatprep.subr.mxu0 0.0
    %318 = vmatpush1.msra.mxu0 %v280
    %319 = vmatprep.subr.mxu0 0.0
    %320 = vmatpush1.msra.mxu0 %v281
    %321 = vmatprep.subr.mxu0 0.0
    %322 = vmatpush1.msra.mxu0 %v282
    %323 = vmatprep.subr.mxu0 0.0
    %324 = vmatpush1.msra.mxu0 %v283
    %325 = vmatprep.subr.mxu0 0.0
    %326 = vmatpush1.msra.mxu0 %v284
    %327 = vmatprep.subr.mxu0 0.0
    %328 = vmatpush1.msra.mxu0 %v285
    %329 = vmatprep.subr.mxu0 0.0
    %330 = vmatpush1.msra.mxu0 %v286
    %331 = vmatprep.subr.mxu0 0.0
    %332 = vmatpush1.msra.mxu0 %v287
    %333 = vmatprep.subr.mxu0 0.0
    %334 = vmatpush1.msra.mxu0 %v288
    %335 = vmatprep.subr.mxu0 0.0
    %336 = vmatpush1.msra.mxu0 %v289
    %337 = vmatprep.subr.mxu0 0.0
    %338 = vmatpush1.msra.mxu0 %v290
    %339 = vmatprep.subr.mxu0 0.0
    %340 = vmatpush1.msra.mxu0 %v291
    %341 = vmatprep.subr.mxu0 0.0
    %342 = vmatpush1.msra.mxu0 %v292
    %343 = vmatprep.subr.mxu0 0.0
    %344 = vmatpush1.msra.mxu0 %v293
    %345 = vmatprep.subr.mxu0 0.0
    %346 = vmatpush1.msra.mxu0 %v294
    %347 = vmatprep.subr.mxu0 0.0
    %348 = vmatpush1.msra.mxu0 %v295
    %349 = vmatprep.subr.mxu0 0.0
    %350 = vmatpush1.msra.mxu0 %v296
    %351 = vmatprep.subr.mxu0 0.0
    %352 = vmatpush1.msra.mxu0 %v297
    %353 = vmatprep.subr.mxu0 0.0
    %354 = vmatpush1.msra.mxu0 %v298
    %355 = vmatprep.subr.mxu0 0.0
    %356 = vmatpush1.msra.mxu0 %v299
    %357 = vmatprep.subr.mxu0 0.0
    %358 = vmatpush1.msra.mxu0 %v300
    %359 = vmatprep.subr.mxu0 0.0
    %360 = vmatpush1.msra.mxu0 %v301
    %361 = vmatprep.subr.mxu0 0.0
    %362 = vmatpush1.msra.mxu0 %v302
    %363 = vmatprep.subr.mxu0 0.0
    %364 = vmatpush1.msra.mxu0 %v303
    %365 = vmatprep.subr.mxu0 0.0
    %366 = vmatpush1.msra.mxu0 %v304
    %367 = vmatprep.subr.mxu0 0.0
    %368 = vmatpush1.msra.mxu0 %v305
    %369 = vmatprep.subr.mxu0 0.0
    %370 = vmatpush1.msra.mxu0 %v306
    %371 = vmatprep.mubr.f32.mxu0 %v274
    %372 = vmatmul.mubr.f32.gmra.mrb[0].mxu0 %v273
    %v373 = vpop.f32.mrb[0].mxu0
    %v374 = vadd.f32 0.0, %v373
    %v375 = vpop.f32.mrb[0].mxu0
    %376 = vdwg.mxu0
    %v377 = vmax.f32 %v374, 0.0
    %v378 = vld [vmem:[%s3] sm:$0xff]
    %v379 = vld [vmem:[%s3 + $0x8] sm:$0xff]
    %v380 = vld [vmem:[%s3 + $0x10] sm:$0xff]
    %v381 = vld [vmem:[%s3 + $0x18] sm:$0xff]
    %v382 = vld [vmem:[%s3 + $0x20] sm:$0xff]
    %v383 = vld [vmem:[%s3 + $0x28] sm:$0xff]
    %v384 = vld [vmem:[%s3 + $0x30] sm:$0xff]
    %v385 = vld [vmem:[%s3 + $0x38] sm:$0xff]
    %v386 = vld [vmem:[%s3 + $0x40] sm:$0xff]
    %v387 = vld [vmem:[%s3 + $0x48] sm:$0xff]
    %v388 = vld [vmem:[%s3 + $0x50] sm:$0xff]
    %v389 = vld [vmem:[%s3 + $0x58] sm:$0xff]
    %v390 = vld [vmem:[%s3 + $0x60] sm:$0xff]
    %v391 = vld [vmem:[%s3 + $0x68] sm:$0xff]
    %v392 = vld [vmem:[%s3 + $0x70] sm:$0xff]
    %v393 = vld [vmem:[%s3 + $0x78] sm:$0xff]
    %394 = vmatprep.subr.mxu0 0.0
    %395 = vmatpush1.msra.mxu0 %v378
    %396 = vmatprep.subr.mxu0 0.0
    %397 = vmatpush1.msra.mxu0 %v379
    %398 = vmatprep.subr.mxu0 0.0
    %399 = vmatpush1.msra.mxu0 %v380
    %400 = vmatprep.subr.mxu0 0.0
    %401 = vmatpush1.msra.mxu0 %v381
    %402 = vmatprep.subr.mxu0 0.0
    %403 = vmatpush1.msra.mxu0 %v382
    %404 = vmatprep.subr.mxu0 0.0
    %405 = vmatpush1.msra.mxu0 %v383
    %406 = vmatprep.subr.mxu0 0.0
    %407 = vmatpush1.msra.mxu0 %v384
    %408 = vmatprep.subr.mxu0 0.0
    %409 = vmatpush1.msra.mxu0 %v385
    %410 = vmatprep.subr.mxu0 0.0
    %411 = vmatpush1.msra.mxu0 %v386
    %412 = vmatprep.subr.mxu0 0.0
    %413 = vmatpush1.msra.mxu0 %v387
    %414 = vmatprep.subr.mxu0 0.0
    %415 = vmatpush1.msra.mxu0 %v388
    %416 = vmatprep.subr.mxu0 0.0
    %417 = vmatpush1.msra.mxu0 %v389
    %418 = vmatprep.subr.mxu0 0.0
    %419 = vmatpush1.msra.mxu0 %v390
    %420 = vmatprep.subr.mxu0 0.0
    %421 = vmatpush1.msra.mxu0 %v391
    %422 = vmatprep.subr.mxu0 0.0
    %423 = vmatpush1.msra.mxu0 %v392
    %424 = vmatprep.subr.mxu0 0.0
    %425 = vmatpush1.msra.mxu0 %v393
    %426 = vmatprep.subr.mxu0 0.0
    %427 = vmatpush1.msra.mxu0 0.0
    %428 = vmatprep.subr.mxu0 0.0
    %429 = vmatpush1.msra.mxu0 0.0
    %430 = vmatprep.subr.mxu0 0.0
    %431 = vmatpush1.msra.mxu0 0.0
    %432 = vmatprep.subr.mxu0 0.0
    %433 = vmatpush1.msra.mxu0 0.0
    %434 = vmatprep.subr.mxu0 0.0
    %435 = vmatpush1.msra.mxu0 0.0
    %436 = vmatprep.subr.mxu0 0.0
    %437 = vmatpush1.msra.mxu0 0.0
    %438 = vmatprep.subr.mxu0 0.0
    %439 = vmatpush1.msra.mxu0 0.0
    %440 = vmatprep.subr.mxu0 0.0
    %441 = vmatpush1.msra.mxu0 0.0
    %442 = vmatprep.subr.mxu0 0.0
    %443 = vmatpush1.msra.mxu0 0.0
    %444 = vmatprep.subr.mxu0 0.0
    %445 = vmatpush1.msra.mxu0 0.0
    %446 = vmatprep.subr.mxu0 0.0
    %447 = vmatpush1.msra.mxu0 0.0
    %448 = vmatprep.subr.mxu0 0.0
    %449 = vmatpush1.msra.mxu0 0.0
    %450 = vmatprep.subr.mxu0 0.0
    %451 = vmatpush1.msra.mxu0 0.0
    %452 = vmatprep.subr.mxu0 0.0
    %453 = vmatpush1.msra.mxu0 0.0
    %454 = vmatprep.subr.mxu0 0.0
    %455 = vmatpush1.msra.mxu0 0.0
    %456 = vmatprep.subr.mxu0 0.0
    %457 = vmatpush1.msra.mxu0 0.0
    %458 = vmatprep.mubr.f32.mxu0 0.0
    %459 = vmatmul.mubr.f32.gmra.mrb[0].mxu0 %v377
    %v460 = vpop.f32.mrb[0].mxu0
    %v461 = vadd.f32 0.0, %v460
    %v462 = vpop.f32.mrb[0].mxu0
    %463 = vdwg.mxu0
    %464 = vst [vmem:[#allocation5] sm:$0xff] %v461
    // Predicated region
    $region22: #{net_forward.1} parent=1 // pred_check
      _
    $region23: #{net_forward.1} parent=1 // pred_check_branch
      %466 = sbr.rel (0) target = $region25
    $region24: #{net_forward.1} parent=1 // pred_region
      %s468 = ssub.s32 128, 128
      %469 = vsyncadd [#allocation4], %s468
      %s471 = sshll.u32 [#allocation5], 4
      %s472 = int_to_ptr.vmem [resolvable:$true] %s471
      %474 = dma.vmem_to_hbm [thread:$0]  %s472, 128, %s4, [#allocation4]
    $region25: #{net_forward.1} parent=1 // pred_fallthru
      _
    // Predicated region
    $region26: #{net_forward.1} parent=1 // pred_check
      _
    $region27: #{net_forward.1} parent=1 // pred_check_branch
      %476 = sbr.rel (0) target = $region29
    $region28: #{net_forward.1} parent=1 // pred_region
      %477 = dma.done [#allocation4], 128
    $region29: #{net_forward.1} parent=1 // pred_fallthru
      _
    %478 = vsyncpa [#allocation3], 1
    %479 = vsyncpa [#allocation4], 1

</llo_original>
